<compile_context>
chip_gen: v7x
topology: tpu7x:2x2x1
jax: 0.10.0
libtpu: 0.0.40
codegen_flags: <defaults>
</compile_context>

<pallas_src>
import functools

import jax
import jax.numpy as jnp
from jax import lax
from jax.experimental import pallas as pl
from jax.experimental.pallas import tpu as pltpu


_LANE = 128


def _cdiv(a, b):
    return -(-a // b)


def _round_up(x, m):
    return _cdiv(x, m) * m


def _vmem_budgets(itemsize):
    """Generation-aware (max input-tile bytes, scoped VMEM limit, multi-core?)."""
    try:
        vmem_cap = int(pltpu.get_tpu_info().vmem_capacity_bytes)
    except Exception:
        vmem_cap = 64 << 20                       # conservative (v7x-sized) fallback
    if vmem_cap >= (100 << 20):                   # v5e / v6e: 128 MiB physical VMEM
        vmem_limit = 96 << 20
        multi_core = False                        # 1 TensorCore per chip
    else:                                         # v7x: 64 MiB physical VMEM, 2 TCs
        vmem_limit = 48 << 20
        multi_core = True
    # Footprint model per input tile T (at the input's native width):
    #   2 inputs x 2 pipeline buffers x T  +  ~5 tile-sized f32 temporaries
    #   (the f32 casts of yt/yp and the three products).
    per_tile_units = 4.0 + 5.0 * (4.0 / itemsize)
    max_tile = int(vmem_limit * 0.85 / per_tile_units)
    max_tile = max(512 << 10, min(8 << 20, max_tile))
    return max_tile, vmem_limit, multi_core


def _choose_tiles(rows, hw, itemsize, max_tile_bytes, multi_core):
    """Pick (row_tile, hw_tile, n_hw_blocks) with no wrapper-side padding.

    hw_tile is either the full spatial extent (single reduction step) or a
    power-of-two multiple of 128 lanes (enables VALU-only lane folding into
    the 128-wide partial accumulators).  row_tile is either the full row
    extent or a multiple of the sublane packing (ragged boundary blocks are
    handled by Pallas; garbage rows' outputs are simply never written back).
    """
    sub = 8 if itemsize >= 4 else (16 if itemsize == 2 else 32)
    hw_cap = _round_up(hw, _LANE)
    budget_lanes = max(_LANE, (max_tile_bytes // (sub * itemsize)) // _LANE * _LANE)

    if hw_cap <= budget_lanes:
        hw_tile = hw                              # block dim == full dim: always legal
    else:
        hw_tile = _LANE                           # largest power-of-two*128 in budget
        while hw_tile * 2 <= budget_lanes:
            hw_tile *= 2
    n_hw_blocks = _cdiv(hw, hw_tile)

    lane_bytes = _round_up(hw_tile, _LANE) * itemsize
    row_budget = max(sub, (max_tile_bytes // lane_bytes) // sub * sub)
    row_tile = rows if rows <= row_budget else min(row_budget, 1024)

    # Keep enough grid steps for pipeline overlap (and >= 4 row blocks per
    # TensorCore on dual-core chips), but never shrink a tile below ~1 MiB.
    min_tile_bytes = 1 << 20
    target_steps = 8 if multi_core else 4
    if _cdiv(rows, row_tile) * n_hw_blocks < target_steps:
        want_row_blocks = _cdiv(target_steps, n_hw_blocks)
        cand = _round_up(_cdiv(rows, want_row_blocks), sub)
        if cand < row_tile and cand * lane_bytes >= min_tile_bytes:
            row_tile = cand
    return row_tile, hw_tile, n_hw_blocks


def _fold_lanes(x, width=_LANE):
    """Fold lanes down to `width` with vreg-aligned slice adds (VALU only)."""
    while x.shape[-1] > width:
        half = x.shape[-1] // 2
        x = x[:, :half] + x[:, half:]
    return x


def _cc_loss_kernel(yt_ref, yp_ref, loss_ref,
                    s_xy, s_x, s_y, s_xx, s_yy,
                    *, inv_n, hw, hw_tile, mask_hw, fold):
    # yt_ref / yp_ref: (row_tile, hw_tile) block of the current hw chunk.
    k = pl.program_id(1)

    @pl.when(k == 0)
    def _init():
        s_xy[...] = jnp.zeros_like(s_xy)
        s_x[...] = jnp.zeros_like(s_x)
        s_y[...] = jnp.zeros_like(s_y)
        s_xx[...] = jnp.zeros_like(s_xx)
        s_yy[...] = jnp.zeros_like(s_yy)

    # Accumulate in f32 regardless of input dtype (bf16 is DMA'd at half width
    # and cast here).
    yt = yt_ref[...].astype(jnp.float32)
    yp = yp_ref[...].astype(jnp.float32)

    if mask_hw:
        # Last hw block is ragged: zero the unspecified lanes before ALL sums.
        # For non-last blocks (hw - k*hw_tile >= hw_tile) the mask is all-true.
        lane = lax.broadcasted_iota(jnp.int32, yt.shape, 1)
        valid = lane < (hw - k * hw_tile)
        yt = jnp.where(valid, yt, 0.0)
        yp = jnp.where(valid, yp, 0.0)

    if fold:
        # Lane-partial accumulation: fold to 128 lanes with VALU adds only;
        # the 128->1 XLU reduce is deferred to the finalize block.
        s_xy[...] += _fold_lanes(yt * yp)
        s_x[...] += _fold_lanes(yt)
        s_y[...] += _fold_lanes(yp)
        s_xx[...] += _fold_lanes(yt * yt)
        s_yy[...] += _fold_lanes(yp * yp)
    else:
        # Single hw step: reduce straight to (row_tile, 1).
        s_xy[...] += jnp.sum(yt * yp, axis=1, keepdims=True)
        s_x[...] += jnp.sum(yt, axis=1, keepdims=True)
        s_y[...] += jnp.sum(yp, axis=1, keepdims=True)
        s_xx[...] += jnp.sum(yt * yt, axis=1, keepdims=True)
        s_yy[...] += jnp.sum(yp * yp, axis=1, keepdims=True)

    @pl.when(k == pl.num_programs(1) - 1)
    def _finalize():
        sum_xy = jnp.sum(s_xy[...], axis=1, keepdims=True)
        sum_x = jnp.sum(s_x[...], axis=1, keepdims=True)
        sum_y = jnp.sum(s_y[...], axis=1, keepdims=True)
        sum_xx = jnp.sum(s_xx[...], axis=1, keepdims=True)
        sum_yy = jnp.sum(s_yy[...], axis=1, keepdims=True)
        num = sum_xy - sum_x * sum_y * inv_n
        var_x = sum_xx - sum_x * sum_x * inv_n
        var_y = sum_yy - sum_y * sum_y * inv_n
        # rsqrt on the EUP slot instead of sqrt + VPU divide.  Zero-variance
        # maps give NaN/Inf, matching the PyTorch module (no clamping).
        loss_ref[...] = -(num * lax.rsqrt(var_x * var_y))


def cc_loss(y_pred, y_true, size_average=True, max_tile_bytes=None):
    """Pallas implementation of CCLoss.forward for NCHW y_pred / y_true."""
    assert y_pred.shape == y_true.shape and y_pred.ndim == 4
    n, c, h, w = y_pred.shape
    hw = h * w
    rows = n * c
    itemsize = jnp.dtype(y_pred.dtype).itemsize

    auto_tile, vmem_limit, multi_core = _vmem_budgets(itemsize)
    if max_tile_bytes is None:
        max_tile_bytes = auto_tile

    row_tile, hw_tile, n_hw_blocks = _choose_tiles(
        rows, hw, itemsize, max_tile_bytes, multi_core)
    fold = n_hw_blocks > 1
    mask_hw = (hw % hw_tile) != 0
    acc_w = _LANE if fold else 1

    # Contiguous reshape only — no jnp.pad HBM copies.
    yt2 = y_true.reshape(rows, hw)
    yp2 = y_pred.reshape(rows, hw)

    kernel = functools.partial(
        _cc_loss_kernel, inv_n=1.0 / float(hw), hw=hw, hw_tile=hw_tile,
        mask_hw=mask_hw, fold=fold)

    per_row = pl.pallas_call(
        kernel,
        out_shape=jax.ShapeDtypeStruct((rows, 1), jnp.float32),
        grid_spec=pltpu.PrefetchScalarGridSpec(
            num_scalar_prefetch=0,
            # Reduction (hw) axis last, "arbitrary"; rows axis "parallel".
            grid=(_cdiv(rows, row_tile), n_hw_blocks),
            in_specs=[
                pl.BlockSpec((row_tile, hw_tile), lambda i, k: (i, k)),
                pl.BlockSpec((row_tile, hw_tile), lambda i, k: (i, k)),
            ],
            # Output block index constant along k -> stays resident in VMEM,
            # written back to HBM once per row block (OOB rows discarded).
            out_specs=pl.BlockSpec((row_tile, 1), lambda i, k: (i, 0)),
            scratch_shapes=[pltpu.VMEM((row_tile, acc_w), jnp.float32)] * 5,
        ),
        compiler_params=pltpu.CompilerParams(
            dimension_semantics=("parallel", "arbitrary"),
            vmem_limit_bytes=vmem_limit,
        ),
    )(yt2, yp2)

    loss = per_row[:, 0].reshape(n, c)
    return loss.mean() if size_average else loss.sum()


def _cc_loss_ref(y_pred, y_true, size_average=True):
    """Pure-JAX reference mirroring the PyTorch module."""
    n_elem = y_pred.shape[2] * y_pred.shape[3]
    sum_prod = jnp.sum(y_true * y_pred, axis=(2, 3))
    sum_x = jnp.sum(y_true, axis=(2, 3))
    sum_y = jnp.sum(y_pred, axis=(2, 3))
    sum_x_sq = jnp.sum(y_true ** 2, axis=(2, 3))
    sum_y_sq = jnp.sum(y_pred ** 2, axis=(2, 3))
    num = sum_prod - (sum_x * sum_y) / n_elem
    den = jnp.sqrt((sum_x_sq - sum_x ** 2 / n_elem) *
                   (sum_y_sq - sum_y ** 2 / n_elem))
    loss = -(num / den)
    return loss.mean() if size_average else loss.sum()


if __name__ == "__main__":
    key = jax.random.PRNGKey(0)
    k1, k2, k3, k4 = jax.random.split(key, 4)

    # 1) Primary small NCHW case: batch=2, channels=4, spatial=16x16.
    shape = (2, 4, 16, 16)
    y_pred = jax.nn.sigmoid(jax.random.normal(k1, shape, dtype=jnp.float32))
    y_true = jax.nn.sigmoid(jax.random.normal(k2, shape, dtype=jnp.float32))
    out = jax.block_until_ready(cc_loss(y_pred, y_true, size_average=True))
    ref = jax.block_until_ready(_cc_loss_ref(y_pred, y_true, size_average=True))
    assert jnp.allclose(out, ref, rtol=1e-5, atol=1e-5), (out, ref)

    # 2) Non-tile-friendly dims (rows=3, hw=600), sum reduction — full-dim
    #    blocks, no padding anywhere.
    shape2 = (1, 3, 20, 30)
    yp2 = jax.nn.sigmoid(jax.random.normal(k3, shape2, dtype=jnp.float32))
    yt2 = jax.nn.sigmoid(jax.random.normal(k4, shape2, dtype=jnp.float32))
    out2 = jax.block_until_ready(cc_loss(yp2, yt2, size_average=False))
    ref2 = jax.block_until_ready(_cc_loss_ref(yp2, yt2, size_average=False))
    assert jnp.allclose(out2, ref2, rtol=1e-5, atol=1e-5), (out2, ref2)

    # 3) Force tiny tiles: multi-step hw reduction with lane-partial (128-wide)
    #    accumulators, multiple row blocks and a ragged last row block
    #    (rows=20, row_tile=8 -> garbage rows' outputs discarded by Pallas).
    shape3 = (5, 4, 16, 16)
    yp3 = jax.nn.sigmoid(jax.random.normal(k2, shape3, dtype=jnp.float32))
    yt3 = jax.nn.sigmoid(jax.random.normal(k3, shape3, dtype=jnp.float32))
    out3 = jax.block_until_ready(
        cc_loss(yp3, yt3, size_average=True, max_tile_bytes=2048))
    ref3 = jax.block_until_ready(_cc_loss_ref(yp3, yt3, size_average=True))
    assert jnp.allclose(out3, ref3, rtol=1e-5, atol=1e-5), (out3, ref3)

    # 4) Ragged hw block (hw=300, hw_tile=128): exercises the in-kernel lane
    #    mask that replaced the wrapper-side jnp.pad.
    shape4 = (2, 3, 10, 30)
    yp4 = jax.nn.sigmoid(jax.random.normal(k4, shape4, dtype=jnp.float32))
    yt4 = jax.nn.sigmoid(jax.random.normal(k1, shape4, dtype=jnp.float32))
    out4 = jax.block_until_ready(
        cc_loss(yp4, yt4, size_average=True, max_tile_bytes=2048))
    ref4 = jax.block_until_ready(_cc_loss_ref(yp4, yt4, size_average=True))
    assert jnp.allclose(out4, ref4, rtol=1e-5, atol=1e-5), (out4, ref4)

    print("KERNEL_OK")
</pallas_src>

<mosaic_0001>
module attributes {stable_mosaic.version = 11 : i64} {
  func.func @_cc_loss_kernel(%arg0: i32, %arg1: i32, %arg2: memref<8x256xf32, #tpu.memory_space<vmem>>, %arg3: memref<8x256xf32, #tpu.memory_space<vmem>>, %arg4: memref<8x1xf32, #tpu.memory_space<vmem>>, %arg5: memref<8x1xf32, #tpu.memory_space<vmem>>, %arg6: memref<8x1xf32, #tpu.memory_space<vmem>>, %arg7: memref<8x1xf32, #tpu.memory_space<vmem>>, %arg8: memref<8x1xf32, #tpu.memory_space<vmem>>, %arg9: memref<8x1xf32, #tpu.memory_space<vmem>>) attributes {dimension_semantics = [#tpu.dimension_semantics<parallel>, #tpu.dimension_semantics<arbitrary>], iteration_bounds = array<i64: 1, 1>, scalar_prefetch = 0 : i64, scratch_operands = 5 : i64, tpu.core_type = #tpu.core_type<tc>, window_params = [{transform_indices = @transform_0, window_bounds = array<i64: 8, 256>}, {transform_indices = @transform_1, window_bounds = array<i64: 8, 256>}, {transform_indices = @transform_2, window_bounds = array<i64: 8, 1>}]} {
    %c0_i32 = arith.constant 0 : i32
    %0 = arith.cmpi eq, %arg1, %c0_i32 : i32
    %1 = arith.extui %0 : i1 to i32
    %c0_i32_0 = arith.constant 0 : i32
    %2 = arith.cmpi ne, %1, %c0_i32_0 : i32
    scf.if %2 {
      %cst_30 = arith.constant 0.000000e+00 : f32
      %36 = vector.broadcast %cst_30 : f32 to vector<8x1xf32>
      %c0_31 = arith.constant 0 : index
      %c0_32 = arith.constant 0 : index
      %37 = vector.load %arg5[%c0_31, %c0_32] : memref<8x1xf32, #tpu.memory_space<vmem>>, vector<8x1xf32>
      tpu.vector_store %arg5[%c0_31, %c0_32], %36 {strides = array<i32>} : memref<8x1xf32, #tpu.memory_space<vmem>>, vector<8x1xf32>,
      %cst_33 = arith.constant 0.000000e+00 : f32
      %38 = vector.broadcast %cst_33 : f32 to vector<8x1xf32>
      %c0_34 = arith.constant 0 : index
      %c0_35 = arith.constant 0 : index
      %39 = vector.load %arg6[%c0_34, %c0_35] : memref<8x1xf32, #tpu.memory_space<vmem>>, vector<8x1xf32>
      tpu.vector_store %arg6[%c0_34, %c0_35], %38 {strides = array<i32>} : memref<8x1xf32, #tpu.memory_space<vmem>>, vector<8x1xf32>,
      %cst_36 = arith.constant 0.000000e+00 : f32
      %40 = vector.broadcast %cst_36 : f32 to vector<8x1xf32>
      %c0_37 = arith.constant 0 : index
      %c0_38 = arith.constant 0 : index
      %41 = vector.load %arg7[%c0_37, %c0_38] : memref<8x1xf32, #tpu.memory_space<vmem>>, vector<8x1xf32>
      tpu.vector_store %arg7[%c0_37, %c0_38], %40 {strides = array<i32>} : memref<8x1xf32, #tpu.memory_space<vmem>>, vector<8x1xf32>,
      %cst_39 = arith.constant 0.000000e+00 : f32
      %42 = vector.broadcast %cst_39 : f32 to vector<8x1xf32>
      %c0_40 = arith.constant 0 : index
      %c0_41 = arith.constant 0 : index
      %43 = vector.load %arg8[%c0_40, %c0_41] : memref<8x1xf32, #tpu.memory_space<vmem>>, vector<8x1xf32>
      tpu.vector_store %arg8[%c0_40, %c0_41], %42 {strides = array<i32>} : memref<8x1xf32, #tpu.memory_space<vmem>>, vector<8x1xf32>,
      %cst_42 = arith.constant 0.000000e+00 : f32
      %44 = vector.broadcast %cst_42 : f32 to vector<8x1xf32>
      %c0_43 = arith.constant 0 : index
      %c0_44 = arith.constant 0 : index
      %45 = vector.load %arg9[%c0_43, %c0_44] : memref<8x1xf32, #tpu.memory_space<vmem>>, vector<8x1xf32>
      tpu.vector_store %arg9[%c0_43, %c0_44], %44 {strides = array<i32>} : memref<8x1xf32, #tpu.memory_space<vmem>>, vector<8x1xf32>,
    } else {
    }
    %c0 = arith.constant 0 : index
    %c0_1 = arith.constant 0 : index
    %3 = vector.load %arg2[%c0, %c0_1] : memref<8x256xf32, #tpu.memory_space<vmem>>, vector<8x256xf32>
    %c0_2 = arith.constant 0 : index
    %c0_3 = arith.constant 0 : index
    %4 = vector.load %arg3[%c0_2, %c0_3] : memref<8x256xf32, #tpu.memory_space<vmem>>, vector<8x256xf32>
    %c0_4 = arith.constant 0 : index
    %c0_5 = arith.constant 0 : index
    %5 = vector.load %arg5[%c0_4, %c0_5] : memref<8x1xf32, #tpu.memory_space<vmem>>, vector<8x1xf32>
    %6 = arith.mulf %3, %4 : vector<8x256xf32>
    %cst = arith.constant dense<0.000000e+00> : vector<8xf32>
    %7 = vector.multi_reduction <add>, %6, %cst [1] : vector<8x256xf32> to vector<8xf32>
    %8 = vector.shape_cast %7 : vector<8xf32> to vector<8x1xf32>
    %9 = arith.addf %5, %8 : vector<8x1xf32>
    %c0_6 = arith.constant 0 : index
    %c0_7 = arith.constant 0 : index
    %10 = vector.load %arg5[%c0_6, %c0_7] : memref<8x1xf32, #tpu.memory_space<vmem>>, vector<8x1xf32>
    tpu.vector_store %arg5[%c0_6, %c0_7], %9 {strides = array<i32>} : memref<8x1xf32, #tpu.memory_space<vmem>>, vector<8x1xf32>,
    %c0_8 = arith.constant 0 : index
    %c0_9 = arith.constant 0 : index
    %11 = vector.load %arg6[%c0_8, %c0_9] : memref<8x1xf32, #tpu.memory_space<vmem>>, vector<8x1xf32>
    %cst_10 = arith.constant dense<0.000000e+00> : vector<8xf32>
    %12 = vector.multi_reduction <add>, %3, %cst_10 [1] : vector<8x256xf32> to vector<8xf32>
    %13 = vector.shape_cast %12 : vector<8xf32> to vector<8x1xf32>
    %14 = arith.addf %11, %13 : vector<8x1xf32>
    %c0_11 = arith.constant 0 : index
    %c0_12 = arith.constant 0 : index
    %15 = vector.load %arg6[%c0_11, %c0_12] : memref<8x1xf32, #tpu.memory_space<vmem>>, vector<8x1xf32>
    tpu.vector_store %arg6[%c0_11, %c0_12], %14 {strides = array<i32>} : memref<8x1xf32, #tpu.memory_space<vmem>>, vector<8x1xf32>,
    %c0_13 = arith.constant 0 : index
    %c0_14 = arith.constant 0 : index
    %16 = vector.load %arg7[%c0_13, %c0_14] : memref<8x1xf32, #tpu.memory_space<vmem>>, vector<8x1xf32>
    %cst_15 = arith.constant dense<0.000000e+00> : vector<8xf32>
    %17 = vector.multi_reduction <add>, %4, %cst_15 [1] : vector<8x256xf32> to vector<8xf32>
    %18 = vector.shape_cast %17 : vector<8xf32> to vector<8x1xf32>
    %19 = arith.addf %16, %18 : vector<8x1xf32>
    %c0_16 = arith.constant 0 : index
    %c0_17 = arith.constant 0 : index
    %20 = vector.load %arg7[%c0_16, %c0_17] : memref<8x1xf32, #tpu.memory_space<vmem>>, vector<8x1xf32>
    tpu.vector_store %arg7[%c0_16, %c0_17], %19 {strides = array<i32>} : memref<8x1xf32, #tpu.memory_space<vmem>>, vector<8x1xf32>,
    %c0_18 = arith.constant 0 : index
    %c0_19 = arith.constant 0 : index
    %21 = vector.load %arg8[%c0_18, %c0_19] : memref<8x1xf32, #tpu.memory_space<vmem>>, vector<8x1xf32>
    %22 = arith.mulf %3, %3 : vector<8x256xf32>
    %cst_20 = arith.constant dense<0.000000e+00> : vector<8xf32>
    %23 = vector.multi_reduction <add>, %22, %cst_20 [1] : vector<8x256xf32> to vector<8xf32>
    %24 = vector.shape_cast %23 : vector<8xf32> to vector<8x1xf32>
    %25 = arith.addf %21, %24 : vector<8x1xf32>
    %c0_21 = arith.constant 0 : index
    %c0_22 = arith.constant 0 : index
    %26 = vector.load %arg8[%c0_21, %c0_22] : memref<8x1xf32, #tpu.memory_space<vmem>>, vector<8x1xf32>
    tpu.vector_store %arg8[%c0_21, %c0_22], %25 {strides = array<i32>} : memref<8x1xf32, #tpu.memory_space<vmem>>, vector<8x1xf32>,
    %c0_23 = arith.constant 0 : index
    %c0_24 = arith.constant 0 : index
    %27 = vector.load %arg9[%c0_23, %c0_24] : memref<8x1xf32, #tpu.memory_space<vmem>>, vector<8x1xf32>
    %28 = arith.mulf %4, %4 : vector<8x256xf32>
    %cst_25 = arith.constant dense<0.000000e+00> : vector<8xf32>
    %29 = vector.multi_reduction <add>, %28, %cst_25 [1] : vector<8x256xf32> to vector<8xf32>
    %30 = vector.shape_cast %29 : vector<8xf32> to vector<8x1xf32>
    %31 = arith.addf %27, %30 : vector<8x1xf32>
    %c0_26 = arith.constant 0 : index
    %c0_27 = arith.constant 0 : index
    %32 = vector.load %arg9[%c0_26, %c0_27] : memref<8x1xf32, #tpu.memory_space<vmem>>, vector<8x1xf32>
    tpu.vector_store %arg9[%c0_26, %c0_27], %31 {strides = array<i32>} : memref<8x1xf32, #tpu.memory_space<vmem>>, vector<8x1xf32>,
    %c0_i32_28 = arith.constant 0 : i32
    %33 = arith.cmpi eq, %arg1, %c0_i32_28 : i32
    %34 = arith.extui %33 : i1 to i32
    %c0_i32_29 = arith.constant 0 : i32
    %35 = arith.cmpi ne, %34, %c0_i32_29 : i32
    scf.if %35 {
      %c0_30 = arith.constant 0 : index
      %c0_31 = arith.constant 0 : index
      %36 = vector.load %arg5[%c0_30, %c0_31] : memref<8x1xf32, #tpu.memory_space<vmem>>, vector<8x1xf32>
      %cst_32 = arith.constant dense<0.000000e+00> : vector<8xf32>
      %37 = vector.multi_reduction <add>, %36, %cst_32 [1] : vector<8x1xf32> to vector<8xf32>
      %38 = vector.shape_cast %37 : vector<8xf32> to vector<8x1xf32>
      %c0_33 = arith.constant 0 : index
      %c0_34 = arith.constant 0 : index
      %39 = vector.load %arg6[%c0_33, %c0_34] : memref<8x1xf32, #tpu.memory_space<vmem>>, vector<8x1xf32>
      %cst_35 = arith.constant dense<0.000000e+00> : vector<8xf32>
      %40 = vector.multi_reduction <add>, %39, %cst_35 [1] : vector<8x1xf32> to vector<8xf32>
      %41 = vector.shape_cast %40 : vector<8xf32> to vector<8x1xf32>
      %c0_36 = arith.constant 0 : index
      %c0_37 = arith.constant 0 : index
      %42 = vector.load %arg7[%c0_36, %c0_37] : memref<8x1xf32, #tpu.memory_space<vmem>>, vector<8x1xf32>
      %cst_38 = arith.constant dense<0.000000e+00> : vector<8xf32>
      %43 = vector.multi_reduction <add>, %42, %cst_38 [1] : vector<8x1xf32> to vector<8xf32>
      %44 = vector.shape_cast %43 : vector<8xf32> to vector<8x1xf32>
      %c0_39 = arith.constant 0 : index
      %c0_40 = arith.constant 0 : index
      %45 = vector.load %arg8[%c0_39, %c0_40] : memref<8x1xf32, #tpu.memory_space<vmem>>, vector<8x1xf32>
      %cst_41 = arith.constant dense<0.000000e+00> : vector<8xf32>
      %46 = vector.multi_reduction <add>, %45, %cst_41 [1] : vector<8x1xf32> to vector<8xf32>
      %47 = vector.shape_cast %46 : vector<8xf32> to vector<8x1xf32>
      %c0_42 = arith.constant 0 : index
      %c0_43 = arith.constant 0 : index
      %48 = vector.load %arg9[%c0_42, %c0_43] : memref<8x1xf32, #tpu.memory_space<vmem>>, vector<8x1xf32>
      %cst_44 = arith.constant dense<0.000000e+00> : vector<8xf32>
      %49 = vector.multi_reduction <add>, %48, %cst_44 [1] : vector<8x1xf32> to vector<8xf32>
      %50 = vector.shape_cast %49 : vector<8xf32> to vector<8x1xf32>
      %51 = arith.mulf %41, %44 : vector<8x1xf32>
      %cst_45 = arith.constant 3.906250e-03 : f32
      %52 = vector.broadcast %cst_45 : f32 to vector<8x1xf32>
      %53 = arith.mulf %51, %52 : vector<8x1xf32>
      %54 = arith.subf %38, %53 : vector<8x1xf32>
      %55 = arith.mulf %41, %41 : vector<8x1xf32>
      %cst_46 = arith.constant 3.906250e-03 : f32
      %56 = vector.broadcast %cst_46 : f32 to vector<8x1xf32>
      %57 = arith.mulf %55, %56 : vector<8x1xf32>
      %58 = arith.subf %47, %57 : vector<8x1xf32>
      %59 = arith.mulf %44, %44 : vector<8x1xf32>
      %cst_47 = arith.constant 3.906250e-03 : f32
      %60 = vector.broadcast %cst_47 : f32 to vector<8x1xf32>
      %61 = arith.mulf %59, %60 : vector<8x1xf32>
      %62 = arith.subf %50, %61 : vector<8x1xf32>
      %63 = arith.mulf %58, %62 : vector<8x1xf32>
      %64 = math.rsqrt %63 : vector<8x1xf32>
      %65 = arith.mulf %54, %64 : vector<8x1xf32>
      %cst_48 = arith.constant 0.000000e+00 : f32
      %66 = vector.broadcast %cst_48 : f32 to vector<8x1xf32>
      %67 = arith.subf %66, %65 : vector<8x1xf32>
      %c0_49 = arith.constant 0 : index
      %c0_50 = arith.constant 0 : index
      %68 = vector.load %arg4[%c0_49, %c0_50] : memref<8x1xf32, #tpu.memory_space<vmem>>, vector<8x1xf32>
      tpu.vector_store %arg4[%c0_49, %c0_50], %67 {strides = array<i32>} : memref<8x1xf32, #tpu.memory_space<vmem>>, vector<8x1xf32>,
    } else {
    }
    return
  }
  func.func @transform_0(%arg0: i32, %arg1: i32) -> (i32, i32) {
    %c0_i32 = arith.constant 0 : i32
    return %arg0, %arg1 : i32, i32
  }
  func.func @transform_1(%arg0: i32, %arg1: i32) -> (i32, i32) {
    %c0_i32 = arith.constant 0 : i32
    return %arg0, %arg1 : i32, i32
  }
  func.func @transform_2(%arg0: i32, %arg1: i32) -> (i32, i32) {
    %c0_i32 = arith.constant 0 : i32
    %c0_i32_0 = arith.constant 0 : i32
    return %arg0, %c0_i32 : i32, i32
  }
}

</mosaic_0001>

<llo_original>
// kernel: tpu_custom_call.1
$region0: #{tpu_custom_call.1}
  #allocation0 [shape = 'u32[]', space=smem, size = 0x4, offset = 0x4, fixed_abs, tag = 'smem constant byte address 0x4 - core index']
  #allocation1 [shape = 'u32[144,128]{1,0:T(1,128)}', space=vmem, size = 0x12000, scoped, tag = 'internal scratch']
  #allocation2 [shape = 'f32[8,1]{1,0:T(8,128)}', space=vmem, size = 0x1000, scoped, tag = 'scratch operand']
  #allocation3 [shape = 'f32[8,1]{1,0:T(8,128)}', space=vmem, size = 0x1000, scoped, tag = 'scratch operand']
  #allocation4 [shape = 'f32[8,1]{1,0:T(8,128)}', space=vmem, size = 0x1000, scoped, tag = 'scratch operand']
  #allocation5 [shape = 'f32[8,1]{1,0:T(8,128)}', space=vmem, size = 0x1000, scoped, tag = 'scratch operand']
  #allocation6 [shape = 'f32[8,1]{1,0:T(8,128)}', space=vmem, size = 0x1000, scoped, tag = 'scratch operand']
  %s0 = inlined_call_operand.hbm [shape: f32[8,256], index: 0, kind: input, shape index: {}]
  %s1 = inlined_call_operand.hbm [shape: f32[8,256], index: 1, kind: input, shape index: {}]
  %s2 = inlined_call_operand.vmem [shape: f32[8,1], index: 2, kind: output, shape index: {}]
  %s3 = sld [smem:[#allocation0]]
  $region34: #{tpu_custom_call.1} parent=0
    _
  %s5 = ssub.s32 1, %s3
  %s6 = scalar_select 0, %s5, %s3
  $region1: #{tpu_custom_call.1} parent=0
    #allocation7 [shape = 'u8[8192]{0}', space=vmem, size = 0x2000, scoped, tag = 'input window, operand 0, single buffered']
    #allocation8 [shape = 's32[1]{0}', space=sflag, size = 0x4, scoped, tag = 'scoped memory for tpu_custom_call.1']
    #allocation9 [shape = 'u8[8192]{0}', space=vmem, size = 0x2000, scoped, tag = 'input window, operand 1, single buffered']
    #allocation10 [shape = 's32[1]{0}', space=sflag, size = 0x4, scoped, tag = 'scoped memory for tpu_custom_call.1']
    %7 = vsyncpa [#allocation8], 0
    %8 = vsyncpa [#allocation10], 0
    // Predicated region
    $region2: #{tpu_custom_call.1} parent=1 // pred_check
      _
    $region3: #{tpu_custom_call.1} parent=1 // pred_check_branch
      %10 = sbr.rel (0) target = $region5
    $region4: #{tpu_custom_call.1} parent=1 // pred_region
      %s12 = ssub.s32 256, 256
      %13 = vsyncadd [#allocation8], %s12
      %s15 = sshll.u32 [#allocation7], 4
      %s16 = int_to_ptr.vmem [resolvable:$true] %s15
      %18 = dma.hbm_to_vmem [thread:$0]  %s0, 256, %s16, [#allocation8]
    $region5: #{tpu_custom_call.1} parent=1 // pred_fallthru
      _
    // Predicated region
    $region6: #{tpu_custom_call.1} parent=1 // pred_check
      _
    $region7: #{tpu_custom_call.1} parent=1 // pred_check_branch
      %20 = sbr.rel (0) target = $region9
    $region8: #{tpu_custom_call.1} parent=1 // pred_region
      %s22 = ssub.s32 256, 256
      %23 = vsyncadd [#allocation10], %s22
      %s25 = sshll.u32 [#allocation9], 4
      %s26 = int_to_ptr.vmem [resolvable:$true] %s25
      %28 = dma.hbm_to_vmem [thread:$0]  %s1, 256, %s26, [#allocation10]
    $region9: #{tpu_custom_call.1} parent=1 // pred_fallthru
      _
    // Predicated region
    $region10: #{tpu_custom_call.1} parent=1 // pred_check
      _
    $region11: #{tpu_custom_call.1} parent=1 // pred_check_branch
      %30 = sbr.rel (0) target = $region13
    $region12: #{tpu_custom_call.1} parent=1 // pred_region
      %31 = dma.done [#allocation8], 256
    $region13: #{tpu_custom_call.1} parent=1 // pred_fallthru
      _
    // Predicated region
    $region14: #{tpu_custom_call.1} parent=1 // pred_check
      _
    $region15: #{tpu_custom_call.1} parent=1 // pred_check_branch
      %33 = sbr.rel (0) target = $region17
    $region16: #{tpu_custom_call.1} parent=1 // pred_region
      %34 = dma.done [#allocation10], 256
    $region17: #{tpu_custom_call.1} parent=1 // pred_fallthru
      _
    %p35 = scmp.eq.s32.totalorder 0, 0
    // Predicated region
    $region18: #{tpu_custom_call.1} parent=1 // pred_check
      %p36 = pneg %p35
    $region19: #{tpu_custom_call.1} parent=1 // pred_check_branch
      %38 = sbr.rel (%p36) target = $region21
    $region20: #{tpu_custom_call.1} parent=1 // pred_region
      %vm39 = vcmask 7168
      %40 = vst.msk [vmem:[#allocation2] sm:$0xff] %vm39, 0.0
      %41 = vst.msk [vmem:[#allocation3] sm:$0xff] %vm39, 0.0
      %42 = vst.msk [vmem:[#allocation4] sm:$0xff] %vm39, 0.0
      %43 = vst.msk [vmem:[#allocation5] sm:$0xff] %vm39, 0.0
      %44 = vst.msk [vmem:[#allocation6] sm:$0xff] %vm39, 0.0
    $region21: #{tpu_custom_call.1} parent=1 // pred_fallthru
      _
    %v45 = vld [vmem:[#allocation7] sm:$0xff]
    %v46 = vld [vmem:[#allocation7 + $0x8] sm:$0xff]
    %v47 = vld [vmem:[#allocation9] sm:$0xff]
    %v48 = vld [vmem:[#allocation9 + $0x8] sm:$0xff]
    %v49 = vld [vmem:[#allocation2] sm:$0xff]
    %v50 = vmul.f32 %v45, %v47
    %v51 = vmul.f32 %v46, %v48
    %v52 = vadd.f32 %v50, %v51
    %53 = vadd.xlane.f32.xlu0 %v52
    %v54 = vpop.xlane.xlu0 %53
    %v55 = vadd.f32 %v49, %v54
    %vm56 = vcmask 7168
    %57 = vst.msk [vmem:[#allocation2] sm:$0xff] %vm56, %v55
    %v58 = vld [vmem:[#allocation3] sm:$0xff]
    %v59 = vadd.f32 %v45, %v46
    %60 = vadd.xlane.f32.xlu0 %v59
    %v61 = vpop.xlane.xlu0 %60
    %v62 = vadd.f32 %v58, %v61
    %63 = vst.msk [vmem:[#allocation3] sm:$0xff] %vm56, %v62
    %v64 = vld [vmem:[#allocation4] sm:$0xff]
    %v65 = vadd.f32 %v47, %v48
    %66 = vadd.xlane.f32.xlu0 %v65
    %v67 = vpop.xlane.xlu0 %66
    %v68 = vadd.f32 %v64, %v67
    %69 = vst.msk [vmem:[#allocation4] sm:$0xff] %vm56, %v68
    %v70 = vld [vmem:[#allocation5] sm:$0xff]
    %v71 = vmul.f32 %v45, %v45
    %v72 = vmul.f32 %v46, %v46
    %v73 = vadd.f32 %v71, %v72
    %74 = vadd.xlane.f32.xlu0 %v73
    %v75 = vpop.xlane.xlu0 %74
    %v76 = vadd.f32 %v70, %v75
    %77 = vst.msk [vmem:[#allocation5] sm:$0xff] %vm56, %v76
    %v78 = vld [vmem:[#allocation6] sm:$0xff]
    %v79 = vmul.f32 %v47, %v47
    %v80 = vmul.f32 %v48, %v48
    %v81 = vadd.f32 %v79, %v80
    %82 = vadd.xlane.f32.xlu0 %v81
    %v83 = vpop.xlane.xlu0 %82
    %v84 = vadd.f32 %v78, %v83
    %85 = vst.msk [vmem:[#allocation6] sm:$0xff] %vm56, %v84
    // Predicated region
    $region22: #{tpu_custom_call.1} parent=1 // pred_check
      %p86 = pneg %p35
    $region23: #{tpu_custom_call.1} parent=1 // pred_check_branch
      %88 = sbr.rel (%p86) target = $region25
    $region24: #{tpu_custom_call.1} parent=1 // pred_region
      %v89 = vld [vmem:[#allocation2] sm:$0xff]
      %v90 = vadd.f32 %v89, 0.0
      %v91 = vld [vmem:[#allocation3] sm:$0xff]
      %v92 = vadd.f32 %v91, 0.0
      %v93 = vld [vmem:[#allocation4] sm:$0xff]
      %v94 = vadd.f32 %v93, 0.0
      %v95 = vld [vmem:[#allocation5] sm:$0xff]
      %v96 = vadd.f32 %v95, 0.0
      %v97 = vld [vmem:[#allocation6] sm:$0xff]
      %v98 = vadd.f32 %v97, 0.0
      %v99 = vmul.f32 %v92, %v94
      %v100 = vmul.f32 %v99, 0.00390625
      %v101 = vsub.f32 %v90, %v100
      %v102 = vmul.f32 %v92, %v92
      %v103 = vmul.f32 %v102, 0.00390625
      %v104 = vsub.f32 %v96, %v103
      %v105 = vmul.f32 %v94, %v94
      %v106 = vmul.f32 %v105, 0.00390625
      %v107 = vsub.f32 %v98, %v106
      %v108 = vmul.f32 %v104, %v107
      %v109 = vrsqrt.pop %v108
      %v110 = vmul.f32 %v101, %v109
      %v111 = vsub.f32 0.0, %v110
      %112 = vst.msk [vmem:[%s2] sm:$0xff] %vm56, %v111
    $region25: #{tpu_custom_call.1} parent=1 // pred_fallthru
      _
    // Predicated region
    $region26: #{tpu_custom_call.1} parent=1 // pred_check
      _
    $region27: #{tpu_custom_call.1} parent=1 // pred_check_branch
      %114 = sbr.rel (0) target = $region29
    $region28: #{tpu_custom_call.1} parent=1 // pred_region
      _
    $region29: #{tpu_custom_call.1} parent=1 // pred_fallthru
      _
    // Predicated region
    $region30: #{tpu_custom_call.1} parent=1 // pred_check
      _
    $region31: #{tpu_custom_call.1} parent=1 // pred_check_branch
      %116 = sbr.rel (0) target = $region33
    $region32: #{tpu_custom_call.1} parent=1 // pred_region
      _
    $region33: #{tpu_custom_call.1} parent=1 // pred_fallthru
      _
    %117 = vsyncpa [#allocation8], 1
    %118 = vsyncpa [#allocation10], 1

</llo_original>
